<compile_context>
chip_gen: v7x
topology: tpu7x:2x2x1
jax: 0.10.0
libtpu: 0.0.40
codegen_flags: <defaults>
</compile_context>

<pallas_src>
import functools
import math

import jax
import jax.numpy as jnp
from jax.experimental import pallas as pl
from jax.experimental.pallas import tpu as pltpu


def _gcn_kernel(x2d_ref, att_ref, w_ref, b_ref, o_ref, *, batch: int, node_n: int):
    # x2d_ref: (B*N, Fin)   batch flattened into the matmul M dimension
    # att_ref: (N, N)
    # w_ref:   (Fin, Fout)
    # b_ref:   (1, Fout)
    # o_ref:   (B, N, Fout)
    #
    # One weight matmul over the flattened batch (M = B*N), f32 accumulation.
    support = jnp.dot(x2d_ref[...], w_ref[...],
                      preferred_element_type=jnp.float32)        # (B*N, Fout)

    att = att_ref[...]                                           # (N, N)
    bias = b_ref[...]                                            # (1, Fout), hoisted

    # Tiny static batch: plain unroll (B matmuls).  If B ever grows, make this
    # a grid axis (v7x: two TCs) instead of a larger unroll.
    for b in range(batch):
        sup_b = support[b * node_n:(b + 1) * node_n, :]          # (N, Fout)
        out_b = jnp.dot(att, sup_b,
                        preferred_element_type=jnp.float32)      # (N, Fout)
        o_ref[b] = (out_b + bias).astype(o_ref.dtype)


@jax.jit
def graph_convolution(x, weight, att, bias=None):
    """x: (B, N, Fin), weight: (Fin, Fout), att: (N, N), bias: (Fout,) or None."""
    B, N, Fin = x.shape
    Fout = weight.shape[1]

    # Static VMEM guard: everything is resident with no grid.  Stay well under
    # the most restrictive scoped default (v7x) before considering tiling.
    itemsize = jnp.dtype(x.dtype).itemsize
    resident_bytes = itemsize * (B * N * Fin + N * N + Fin * Fout
                                 + Fout + 2 * B * N * Fout)
    assert resident_bytes < (16 << 20), (
        "Problem too large for the no-grid VMEM-resident path; add a grid over "
        "att row-blocks (see TODO).")

    # Flatten batch into M for a single weight matmul (contiguous reshape, free).
    x2d = x.reshape(B * N, Fin)

    if bias is None:
        b2d = jnp.zeros((1, Fout), dtype=x.dtype)
    else:
        b2d = bias.reshape(1, Fout).astype(x.dtype)

    # Advisory cost estimate with the true output width (no padding).
    flops = 2 * (B * N) * Fin * Fout + 2 * B * N * N * Fout
    bytes_accessed = itemsize * (x2d.size + att.size + weight.size
                                 + b2d.size + B * N * Fout)

    vmem = pltpu.MemorySpace.VMEM
    out = pl.pallas_call(
        functools.partial(_gcn_kernel, batch=B, node_n=N),
        out_shape=jax.ShapeDtypeStruct((B, N, Fout), x.dtype),
        # No grid: single invocation, whole arrays resident in VMEM.
        in_specs=[
            pl.BlockSpec(memory_space=vmem),   # x2d     (B*N, Fin)
            pl.BlockSpec(memory_space=vmem),   # att     (N, N)
            pl.BlockSpec(memory_space=vmem),   # weight  (Fin, Fout)
            pl.BlockSpec(memory_space=vmem),   # bias    (1, Fout)
        ],
        out_specs=pl.BlockSpec(memory_space=vmem),
        cost_estimate=pl.CostEstimate(
            flops=flops, transcendentals=0, bytes_accessed=bytes_accessed),
    )(x2d, att, weight, b2d)

    return out


if __name__ == "__main__":
    # Module hyperparameters (small, consistent with __init__ defaults).
    in_features = 16
    out_features = 32
    node_n = 30
    batch = 2

    key = jax.random.PRNGKey(0)
    k_x, k_w, k_a, k_b = jax.random.split(key, 4)

    # Deterministic init matching reset_parameters(): uniform(-stdv, stdv),
    # stdv = 1 / sqrt(out_features).
    stdv = 1.0 / math.sqrt(out_features)
    weight = jax.random.uniform(k_w, (in_features, out_features),
                                dtype=jnp.float32, minval=-stdv, maxval=stdv)
    att = jax.random.uniform(k_a, (node_n, node_n),
                             dtype=jnp.float32, minval=-stdv, maxval=stdv)
    bias = jax.random.uniform(k_b, (out_features,),
                              dtype=jnp.float32, minval=-stdv, maxval=stdv)

    x = jax.random.normal(k_x, (batch, node_n, in_features), dtype=jnp.float32)

    out = graph_convolution(x, weight, att, bias)
    out = jax.block_until_ready(out)

    # Reference check in plain JAX (same semantics as the PyTorch forward).
    ref = jnp.matmul(att, jnp.matmul(x, weight)) + bias
    assert out.shape == (batch, node_n, out_features)
    assert jnp.allclose(out, ref, atol=1e-5, rtol=1e-5)

    # Also exercise the bias=None path of the module.
    out_nb = jax.block_until_ready(graph_convolution(x, weight, att, None))
    ref_nb = jnp.matmul(att, jnp.matmul(x, weight))
    assert jnp.allclose(out_nb, ref_nb, atol=1e-5, rtol=1e-5)

    print("KERNEL_OK")
</pallas_src>

<mosaic_0001>
module attributes {stable_mosaic.version = 11 : i64} {
  func.func @_gcn_kernel(%arg0: memref<60x16xf32, #tpu.memory_space<vmem>>, %arg1: memref<30x30xf32, #tpu.memory_space<vmem>>, %arg2: memref<16x32xf32, #tpu.memory_space<vmem>>, %arg3: memref<1x32xf32, #tpu.memory_space<vmem>>, %arg4: memref<2x30x32xf32, #tpu.memory_space<vmem>>) attributes {dimension_semantics = [], scalar_prefetch = 0 : i64, scratch_operands = 0 : i64, tpu.core_type = #tpu.core_type<tc>} {
    %c0 = arith.constant 0 : index
    %c0_0 = arith.constant 0 : index
    %0 = vector.load %arg0[%c0, %c0_0] : memref<60x16xf32, #tpu.memory_space<vmem>>, vector<60x16xf32>
    %c0_1 = arith.constant 0 : index
    %c0_2 = arith.constant 0 : index
    %1 = vector.load %arg2[%c0_1, %c0_2] : memref<16x32xf32, #tpu.memory_space<vmem>>, vector<16x32xf32>
    %cst = arith.constant dense<0.000000e+00> : vector<60x32xf32>
    %2 = tpu.matmul %0, %1, %cst {dimension_numbers = #tpu.dot_dimension_numbers<[1], [0], [0], [1], [0, 0, 1, 1], [], []>} : vector<60x16xf32>, vector<16x32xf32>, vector<60x32xf32> -> vector<60x32xf32>
    %c0_3 = arith.constant 0 : index
    %c0_4 = arith.constant 0 : index
    %3 = vector.load %arg1[%c0_3, %c0_4] : memref<30x30xf32, #tpu.memory_space<vmem>>, vector<30x30xf32>
    %c0_5 = arith.constant 0 : index
    %c0_6 = arith.constant 0 : index
    %4 = vector.load %arg3[%c0_5, %c0_6] : memref<1x32xf32, #tpu.memory_space<vmem>>, vector<1x32xf32>
    %5 = vector.extract_strided_slice %2 {offsets = [0, 0], sizes = [30, 32], strides = [1, 1]} : vector<60x32xf32> to vector<30x32xf32>
    %cst_7 = arith.constant dense<0.000000e+00> : vector<30x32xf32>
    %6 = tpu.matmul %3, %5, %cst_7 {dimension_numbers = #tpu.dot_dimension_numbers<[1], [0], [0], [1], [0, 0, 1, 1], [], []>} : vector<30x30xf32>, vector<30x32xf32>, vector<30x32xf32> -> vector<30x32xf32>
    %7 = vector.broadcast %4 : vector<1x32xf32> to vector<30x32xf32>
    %8 = arith.addf %6, %7 : vector<30x32xf32>
    %c0_8 = arith.constant 0 : index
    %c0_9 = arith.constant 0 : index
    %c0_10 = arith.constant 0 : index
    %9 = vector.load %arg4[%c0_8, %c0_9, %c0_10] : memref<2x30x32xf32, #tpu.memory_space<vmem>>, vector<1x30x32xf32>
    %10 = vector.shape_cast %9 : vector<1x30x32xf32> to vector<30x32xf32>
    %11 = vector.shape_cast %8 : vector<30x32xf32> to vector<1x30x32xf32>
    tpu.vector_store %arg4[%c0_8, %c0_9, %c0_10], %11 {strides = array<i32>} : memref<2x30x32xf32, #tpu.memory_space<vmem>>, vector<1x30x32xf32>,
    %12 = vector.extract_strided_slice %2 {offsets = [30, 0], sizes = [30, 32], strides = [1, 1]} : vector<60x32xf32> to vector<30x32xf32>
    %cst_11 = arith.constant dense<0.000000e+00> : vector<30x32xf32>
    %13 = tpu.matmul %3, %12, %cst_11 {dimension_numbers = #tpu.dot_dimension_numbers<[1], [0], [0], [1], [0, 0, 1, 1], [], []>} : vector<30x30xf32>, vector<30x32xf32>, vector<30x32xf32> -> vector<30x32xf32>
    %14 = vector.broadcast %4 : vector<1x32xf32> to vector<30x32xf32>
    %15 = arith.addf %13, %14 : vector<30x32xf32>
    %c1 = arith.constant 1 : index
    %c0_12 = arith.constant 0 : index
    %c0_13 = arith.constant 0 : index
    %16 = vector.load %arg4[%c1, %c0_12, %c0_13] : memref<2x30x32xf32, #tpu.memory_space<vmem>>, vector<1x30x32xf32>
    %17 = vector.shape_cast %16 : vector<1x30x32xf32> to vector<30x32xf32>
    %18 = vector.shape_cast %15 : vector<30x32xf32> to vector<1x30x32xf32>
    tpu.vector_store %arg4[%c1, %c0_12, %c0_13], %18 {strides = array<i32>} : memref<2x30x32xf32, #tpu.memory_space<vmem>>, vector<1x30x32xf32>,
    return
  }
}

</mosaic_0001>

<llo_original>
// kernel: graph_convolution.1
$region0: #{graph_convolution.1}
  #allocation0 [shape = 'u32[]', space=smem, size = 0x4, offset = 0x4, fixed_abs, tag = 'smem constant byte address 0x4 - core index']
  #allocation1 [shape = 'u32[144,128]{1,0:T(1,128)}', space=vmem, size = 0x12000, scoped, tag = 'internal scratch']
  %s0 = inlined_call_operand.vmem [shape: f32[60,16], index: 0, kind: input, shape index: {}]
  %s1 = inlined_call_operand.vmem [shape: f32[30,30], index: 1, kind: input, shape index: {}]
  %s2 = inlined_call_operand.vmem [shape: f32[16,32], index: 2, kind: input, shape index: {}]
  %s3 = inlined_call_operand.vmem [shape: f32[1,32], index: 3, kind: input, shape index: {}]
  %s4 = inlined_call_operand.vmem [shape: f32[2,30,32], index: 4, kind: output, shape index: {}]
  %s5 = sld [smem:[#allocation0]]
  $region26: #{graph_convolution.1} parent=0
    _
  %s7 = ssub.s32 1, %s5
  %s8 = scalar_select 0, %s7, %s5
  // Predicated region
  $region2: #{graph_convolution.1} parent=0 // pred_check
    _
  $region3: #{graph_convolution.1} parent=0 // pred_check_branch
    %10 = sbr.rel (0) target = $region5
  $region4: #{graph_convolution.1} parent=0 // pred_region
    _
  $region5: #{graph_convolution.1} parent=0 // pred_fallthru
    _
  // Predicated region
  $region6: #{graph_convolution.1} parent=0 // pred_check
    _
  $region7: #{graph_convolution.1} parent=0 // pred_check_branch
    %12 = sbr.rel (0) target = $region9
  $region8: #{graph_convolution.1} parent=0 // pred_region
    _
  $region9: #{graph_convolution.1} parent=0 // pred_fallthru
    _
  // Predicated region
  $region10: #{graph_convolution.1} parent=0 // pred_check
    _
  $region11: #{graph_convolution.1} parent=0 // pred_check_branch
    %14 = sbr.rel (0) target = $region13
  $region12: #{graph_convolution.1} parent=0 // pred_region
    _
  $region13: #{graph_convolution.1} parent=0 // pred_fallthru
    _
  // Predicated region
  $region14: #{graph_convolution.1} parent=0 // pred_check
    _
  $region15: #{graph_convolution.1} parent=0 // pred_check_branch
    %16 = sbr.rel (0) target = $region17
  $region16: #{graph_convolution.1} parent=0 // pred_region
    _
  $region17: #{graph_convolution.1} parent=0 // pred_fallthru
    _
  %v17 = vld [vmem:[%s0] sm:$0xff]
  %v18 = vld [vmem:[%s0 + $0x8] sm:$0xff]
  %v19 = vld [vmem:[%s0 + $0x10] sm:$0xff]
  %v20 = vld [vmem:[%s0 + $0x18] sm:$0xff]
  %v21 = vld [vmem:[%s0 + $0x20] sm:$0xff]
  %v22 = vld [vmem:[%s0 + $0x28] sm:$0xff]
  %v23 = vld [vmem:[%s0 + $0x30] sm:$0xff]
  %v24 = vld [vmem:[%s0 + $0x38] sm:$0xf]
  %v25 = vld [vmem:[%s2] sm:$0xff]
  %v26 = vld [vmem:[%s2 + $0x8] sm:$0xff]
  %vm27 = vcmask 130048
  %v29 = vsel %vm27, %v17, 0
  %v32 = vsel %vm27, %v18, 0
  %v35 = vsel %vm27, %v19, 0
  %v38 = vsel %vm27, %v20, 0
  %v41 = vsel %vm27, %v21, 0
  %v44 = vsel %vm27, %v22, 0
  %v47 = vsel %vm27, %v23, 0
  %v50 = vsel %vm27, %v24, 0
  %52 = vmatprep.subr.mxu0 0.0
  %53 = vmatpush1.msra.mxu0 %v25
  %54 = vmatprep.subr.mxu0 0.0
  %55 = vmatpush1.msra.mxu0 %v26
  %56 = vmatprep.subr.mxu0 0.0
  %57 = vmatpush1.msra.mxu0 0.0
  %58 = vmatprep.subr.mxu0 0.0
  %59 = vmatpush1.msra.mxu0 0.0
  %60 = vmatprep.subr.mxu0 0.0
  %61 = vmatpush1.msra.mxu0 0.0
  %62 = vmatprep.subr.mxu0 0.0
  %63 = vmatpush1.msra.mxu0 0.0
  %64 = vmatprep.subr.mxu0 0.0
  %65 = vmatpush1.msra.mxu0 0.0
  %66 = vmatprep.subr.mxu0 0.0
  %67 = vmatpush1.msra.mxu0 0.0
  %68 = vmatprep.subr.mxu0 0.0
  %69 = vmatpush1.msra.mxu0 0.0
  %70 = vmatprep.subr.mxu0 0.0
  %71 = vmatpush1.msra.mxu0 0.0
  %72 = vmatprep.subr.mxu0 0.0
  %73 = vmatpush1.msra.mxu0 0.0
  %74 = vmatprep.subr.mxu0 0.0
  %75 = vmatpush1.msra.mxu0 0.0
  %76 = vmatprep.subr.mxu0 0.0
  %77 = vmatpush1.msra.mxu0 0.0
  %78 = vmatprep.subr.mxu0 0.0
  %79 = vmatpush1.msra.mxu0 0.0
  %80 = vmatprep.subr.mxu0 0.0
  %81 = vmatpush1.msra.mxu0 0.0
  %82 = vmatprep.subr.mxu0 0.0
  %83 = vmatpush1.msra.mxu0 0.0
  %84 = vmatprep.subr.mxu0 0.0
  %85 = vmatpush1.msra.mxu0 0.0
  %86 = vmatprep.subr.mxu0 0.0
  %87 = vmatpush1.msra.mxu0 0.0
  %88 = vmatprep.subr.mxu0 0.0
  %89 = vmatpush1.msra.mxu0 0.0
  %90 = vmatprep.subr.mxu0 0.0
  %91 = vmatpush1.msra.mxu0 0.0
  %92 = vmatprep.subr.mxu0 0.0
  %93 = vmatpush1.msra.mxu0 0.0
  %94 = vmatprep.subr.mxu0 0.0
  %95 = vmatpush1.msra.mxu0 0.0
  %96 = vmatprep.subr.mxu0 0.0
  %97 = vmatpush1.msra.mxu0 0.0
  %98 = vmatprep.subr.mxu0 0.0
  %99 = vmatpush1.msra.mxu0 0.0
  %100 = vmatprep.subr.mxu0 0.0
  %101 = vmatpush1.msra.mxu0 0.0
  %102 = vmatprep.subr.mxu0 0.0
  %103 = vmatpush1.msra.mxu0 0.0
  %104 = vmatprep.subr.mxu0 0.0
  %105 = vmatpush1.msra.mxu0 0.0
  %106 = vmatprep.subr.mxu0 0.0
  %107 = vmatpush1.msra.mxu0 0.0
  %108 = vmatprep.subr.mxu0 0.0
  %109 = vmatpush1.msra.mxu0 0.0
  %110 = vmatprep.subr.mxu0 0.0
  %111 = vmatpush1.msra.mxu0 0.0
  %112 = vmatprep.subr.mxu0 0.0
  %113 = vmatpush1.msra.mxu0 0.0
  %114 = vmatprep.subr.mxu0 0.0
  %115 = vmatpush1.msra.mxu0 0.0
  %116 = vmatprep.mubr.f32.mxu0 0.0
  %117 = vmatmul.mubr.f32.gmra.mrb[0].mxu0 %v29
  %v118 = vpop.f32.mrb[0].mxu0
  %v119 = vadd.f32 0.0, %v118
  %v120 = vpop.f32.mrb[0].mxu0
  %121 = vmatprep.mubr.f32.mxu0 0.0
  %122 = vmatmul.mubr.f32.gmra.mrb[0].mxu0 %v32
  %v123 = vpop.f32.mrb[0].mxu0
  %v124 = vadd.f32 0.0, %v123
  %v125 = vpop.f32.mrb[0].mxu0
  %126 = vmatprep.mubr.f32.mxu0 0.0
  %127 = vmatmul.mubr.f32.gmra.mrb[0].mxu0 %v35
  %v128 = vpop.f32.mrb[0].mxu0
  %v129 = vadd.f32 0.0, %v128
  %v130 = vpop.f32.mrb[0].mxu0
  %131 = vmatprep.mubr.f32.mxu0 0.0
  %132 = vmatmul.mubr.f32.gmra.mrb[0].mxu0 %v38
  %v133 = vpop.f32.mrb[0].mxu0
  %v134 = vadd.f32 0.0, %v133
  %v135 = vpop.f32.mrb[0].mxu0
  %136 = vmatprep.mubr.f32.mxu0 0.0
  %137 = vmatmul.mubr.f32.gmra.mrb[0].mxu0 %v41
  %v138 = vpop.f32.mrb[0].mxu0
  %v139 = vadd.f32 0.0, %v138
  %v140 = vpop.f32.mrb[0].mxu0
  %141 = vmatprep.mubr.f32.mxu0 0.0
  %142 = vmatmul.mubr.f32.gmra.mrb[0].mxu0 %v44
  %v143 = vpop.f32.mrb[0].mxu0
  %v144 = vadd.f32 0.0, %v143
  %v145 = vpop.f32.mrb[0].mxu0
  %146 = vmatprep.mubr.f32.mxu0 0.0
  %147 = vmatmul.mubr.f32.gmra.mrb[0].mxu0 %v47
  %v148 = vpop.f32.mrb[0].mxu0
  %v149 = vadd.f32 0.0, %v148
  %v150 = vpop.f32.mrb[0].mxu0
  %151 = vmatprep.mubr.f32.mxu0 0.0
  %152 = vmatmul.mubr.f32.gmra.mrb[0].mxu0 %v50
  %v153 = vpop.f32.mrb[0].mxu0
  %v154 = vadd.f32 0.0, %v153
  %v155 = vpop.f32.mrb[0].mxu0
  %156 = vdwg.mxu0
  %v157 = vld [vmem:[%s1] sm:$0xff]
  %v158 = vld [vmem:[%s1 + $0x8] sm:$0xff]
  %v159 = vld [vmem:[%s1 + $0x10] sm:$0xff]
  %v160 = vld [vmem:[%s1 + $0x18] sm:$0x3f]
  %v161 = vld [vmem:[%s3] sm:$0x1]
  %v163 = vlaneseq
  %v164 = vshrl.u32 %v163, 7
  %v165 = vsub.s32 0, %v164
  %v166 = vrot.slane %v161, %v165
  %vm168 = vcmask 244736
  %v170 = vsel %vm168, %v157, 0
  %v173 = vsel %vm168, %v158, 0
  %v176 = vsel %vm168, %v159, 0
  %v179 = vsel %vm168, %v160, 0
  %vm181 = vcmask 1045504
  %v183 = vsel %vm181, %v134, 0
  %185 = vmatprep.subr.mxu0 0.0
  %186 = vmatpush1.msra.mxu0 %v119
  %187 = vmatprep.subr.mxu0 0.0
  %188 = vmatpush1.msra.mxu0 %v124
  %189 = vmatprep.subr.mxu0 0.0
  %190 = vmatpush1.msra.mxu0 %v129
  %191 = vmatprep.subr.mxu0 0.0
  %192 = vmatpush1.msra.mxu0 %v183
  %193 = vmatprep.subr.mxu0 0.0
  %194 = vmatpush1.msra.mxu0 0.0
  %195 = vmatprep.subr.mxu0 0.0
  %196 = vmatpush1.msra.mxu0 0.0
  %197 = vmatprep.subr.mxu0 0.0
  %198 = vmatpush1.msra.mxu0 0.0
  %199 = vmatprep.subr.mxu0 0.0
  %200 = vmatpush1.msra.mxu0 0.0
  %201 = vmatprep.subr.mxu0 0.0
  %202 = vmatpush1.msra.mxu0 0.0
  %203 = vmatprep.subr.mxu0 0.0
  %204 = vmatpush1.msra.mxu0 0.0
  %205 = vmatprep.subr.mxu0 0.0
  %206 = vmatpush1.msra.mxu0 0.0
  %207 = vmatprep.subr.mxu0 0.0
  %208 = vmatpush1.msra.mxu0 0.0
  %209 = vmatprep.subr.mxu0 0.0
  %210 = vmatpush1.msra.mxu0 0.0
  %211 = vmatprep.subr.mxu0 0.0
  %212 = vmatpush1.msra.mxu0 0.0
  %213 = vmatprep.subr.mxu0 0.0
  %214 = vmatpush1.msra.mxu0 0.0
  %215 = vmatprep.subr.mxu0 0.0
  %216 = vmatpush1.msra.mxu0 0.0
  %217 = vmatprep.subr.mxu0 0.0
  %218 = vmatpush1.msra.mxu0 0.0
  %219 = vmatprep.subr.mxu0 0.0
  %220 = vmatpush1.msra.mxu0 0.0
  %221 = vmatprep.subr.mxu0 0.0
  %222 = vmatpush1.msra.mxu0 0.0
  %223 = vmatprep.subr.mxu0 0.0
  %224 = vmatpush1.msra.mxu0 0.0
  %225 = vmatprep.subr.mxu0 0.0
  %226 = vmatpush1.msra.mxu0 0.0
  %227 = vmatprep.subr.mxu0 0.0
  %228 = vmatpush1.msra.mxu0 0.0
  %229 = vmatprep.subr.mxu0 0.0
  %230 = vmatpush1.msra.mxu0 0.0
  %231 = vmatprep.subr.mxu0 0.0
  %232 = vmatpush1.msra.mxu0 0.0
  %233 = vmatprep.subr.mxu0 0.0
  %234 = vmatpush1.msra.mxu0 0.0
  %235 = vmatprep.subr.mxu0 0.0
  %236 = vmatpush1.msra.mxu0 0.0
  %237 = vmatprep.subr.mxu0 0.0
  %238 = vmatpush1.msra.mxu0 0.0
  %239 = vmatprep.subr.mxu0 0.0
  %240 = vmatpush1.msra.mxu0 0.0
  %241 = vmatprep.subr.mxu0 0.0
  %242 = vmatpush1.msra.mxu0 0.0
  %243 = vmatprep.subr.mxu0 0.0
  %244 = vmatpush1.msra.mxu0 0.0
  %245 = vmatprep.subr.mxu0 0.0
  %246 = vmatpush1.msra.mxu0 0.0
  %247 = vmatprep.subr.mxu0 0.0
  %248 = vmatpush1.msra.mxu0 0.0
  %249 = vmatprep.mubr.f32.mxu0 0.0
  %250 = vmatmul.mubr.f32.gmra.mrb[0].mxu0 %v170
  %v251 = vpop.f32.mrb[0].mxu0
  %v252 = vadd.f32 %v166, %v251
  %v253 = vpop.f32.mrb[0].mxu0
  %254 = vmatprep.mubr.f32.mxu0 0.0
  %255 = vmatmul.mubr.f32.gmra.mrb[0].mxu0 %v173
  %v256 = vpop.f32.mrb[0].mxu0
  %v257 = vadd.f32 %v166, %v256
  %v258 = vpop.f32.mrb[0].mxu0
  %259 = vmatprep.mubr.f32.mxu0 0.0
  %260 = vmatmul.mubr.f32.gmra.mrb[0].mxu0 %v176
  %v261 = vpop.f32.mrb[0].mxu0
  %v262 = vadd.f32 %v166, %v261
  %v263 = vpop.f32.mrb[0].mxu0
  %264 = vmatprep.mubr.f32.mxu0 0.0
  %265 = vmatmul.mubr.f32.gmra.mrb[0].mxu0 %v179
  %v266 = vpop.f32.mrb[0].mxu0
  %v267 = vadd.f32 %v166, %v266
  %v268 = vpop.f32.mrb[0].mxu0
  %269 = vdwg.mxu0
  %vm270 = vcmask 261120
  %271 = vst.msk [vmem:[%s4] sm:$0xff] %vm270, %v252
  %272 = vst.msk [vmem:[%s4 + $0x8] sm:$0xff] %vm270, %v257
  %273 = vst.msk [vmem:[%s4 + $0x10] sm:$0xff] %vm270, %v262
  %vm274 = vcmask 259072
  %275 = vst.msk [vmem:[%s4 + $0x18] sm:$0x3f] %vm274, %v267
  %vm280 = vcmask 1041408
  %v281 = vrot.slane %v134, 6
  %v282 = vrot.slane %v139, 6
  %v283 = vsel %vm280, %v281, %v282
  %v284 = vrot.slane %v144, 6
  %v285 = vsel %vm280, %v282, %v284
  %v286 = vrot.slane %v149, 6
  %v287 = vsel %vm280, %v284, %v286
  %v288 = vrot.slane %v154, 6
  %v289 = vsel %vm280, %v286, %v288
  %v293 = vsel %vm181, %v289, 0
  %295 = vmatprep.subr.mxu0 0.0
  %296 = vmatpush1.msra.mxu0 %v283
  %297 = vmatprep.subr.mxu0 0.0
  %298 = vmatpush1.msra.mxu0 %v285
  %299 = vmatprep.subr.mxu0 0.0
  %300 = vmatpush1.msra.mxu0 %v287
  %301 = vmatprep.subr.mxu0 0.0
  %302 = vmatpush1.msra.mxu0 %v293
  %303 = vmatprep.subr.mxu0 0.0
  %304 = vmatpush1.msra.mxu0 0.0
  %305 = vmatprep.subr.mxu0 0.0
  %306 = vmatpush1.msra.mxu0 0.0
  %307 = vmatprep.subr.mxu0 0.0
  %308 = vmatpush1.msra.mxu0 0.0
  %309 = vmatprep.subr.mxu0 0.0
  %310 = vmatpush1.msra.mxu0 0.0
  %311 = vmatprep.subr.mxu0 0.0
  %312 = vmatpush1.msra.mxu0 0.0
  %313 = vmatprep.subr.mxu0 0.0
  %314 = vmatpush1.msra.mxu0 0.0
  %315 = vmatprep.subr.mxu0 0.0
  %316 = vmatpush1.msra.mxu0 0.0
  %317 = vmatprep.subr.mxu0 0.0
  %318 = vmatpush1.msra.mxu0 0.0
  %319 = vmatprep.subr.mxu0 0.0
  %320 = vmatpush1.msra.mxu0 0.0
  %321 = vmatprep.subr.mxu0 0.0
  %322 = vmatpush1.msra.mxu0 0.0
  %323 = vmatprep.subr.mxu0 0.0
  %324 = vmatpush1.msra.mxu0 0.0
  %325 = vmatprep.subr.mxu0 0.0
  %326 = vmatpush1.msra.mxu0 0.0
  %327 = vmatprep.subr.mxu0 0.0
  %328 = vmatpush1.msra.mxu0 0.0
  %329 = vmatprep.subr.mxu0 0.0
  %330 = vmatpush1.msra.mxu0 0.0
  %331 = vmatprep.subr.mxu0 0.0
  %332 = vmatpush1.msra.mxu0 0.0
  %333 = vmatprep.subr.mxu0 0.0
  %334 = vmatpush1.msra.mxu0 0.0
  %335 = vmatprep.subr.mxu0 0.0
  %336 = vmatpush1.msra.mxu0 0.0
  %337 = vmatprep.subr.mxu0 0.0
  %338 = vmatpush1.msra.mxu0 0.0
  %339 = vmatprep.subr.mxu0 0.0
  %340 = vmatpush1.msra.mxu0 0.0
  %341 = vmatprep.subr.mxu0 0.0
  %342 = vmatpush1.msra.mxu0 0.0
  %343 = vmatprep.subr.mxu0 0.0
  %344 = vmatpush1.msra.mxu0 0.0
  %345 = vmatprep.subr.mxu0 0.0
  %346 = vmatpush1.msra.mxu0 0.0
  %347 = vmatprep.subr.mxu0 0.0
  %348 = vmatpush1.msra.mxu0 0.0
  %349 = vmatprep.subr.mxu0 0.0
  %350 = vmatpush1.msra.mxu0 0.0
  %351 = vmatprep.subr.mxu0 0.0
  %352 = vmatpush1.msra.mxu0 0.0
  %353 = vmatprep.subr.mxu0 0.0
  %354 = vmatpush1.msra.mxu0 0.0
  %355 = vmatprep.subr.mxu0 0.0
  %356 = vmatpush1.msra.mxu0 0.0
  %357 = vmatprep.subr.mxu0 0.0
  %358 = vmatpush1.msra.mxu0 0.0
  %359 = vmatprep.mubr.f32.mxu0 0.0
  %360 = vmatmul.mubr.f32.gmra.mrb[0].mxu0 %v170
  %v361 = vpop.f32.mrb[0].mxu0
  %v362 = vadd.f32 %v166, %v361
  %v363 = vpop.f32.mrb[0].mxu0
  %364 = vmatprep.mubr.f32.mxu0 0.0
  %365 = vmatmul.mubr.f32.gmra.mrb[0].mxu0 %v173
  %v366 = vpop.f32.mrb[0].mxu0
  %v367 = vadd.f32 %v166, %v366
  %v368 = vpop.f32.mrb[0].mxu0
  %369 = vmatprep.mubr.f32.mxu0 0.0
  %370 = vmatmul.mubr.f32.gmra.mrb[0].mxu0 %v176
  %v371 = vpop.f32.mrb[0].mxu0
  %v372 = vadd.f32 %v166, %v371
  %v373 = vpop.f32.mrb[0].mxu0
  %374 = vmatprep.mubr.f32.mxu0 0.0
  %375 = vmatmul.mubr.f32.gmra.mrb[0].mxu0 %v179
  %v376 = vpop.f32.mrb[0].mxu0
  %v377 = vadd.f32 %v166, %v376
  %v378 = vpop.f32.mrb[0].mxu0
  %379 = vdwg.mxu0
  %s380 = scalar_lea.vmem %s4, 32
  %381 = vst.msk [vmem:[%s380] sm:$0xff] %vm270, %v362
  %382 = vst.msk [vmem:[%s380 + $0x8] sm:$0xff] %vm270, %v367
  %383 = vst.msk [vmem:[%s380 + $0x10] sm:$0xff] %vm270, %v372
  %384 = vst.msk [vmem:[%s380 + $0x18] sm:$0x3f] %vm274, %v377
  // Predicated region
  $region18: #{graph_convolution.1} parent=0 // pred_check
    _
  $region19: #{graph_convolution.1} parent=0 // pred_check_branch
    %386 = sbr.rel (0) target = $region21
  $region20: #{graph_convolution.1} parent=0 // pred_region
    _
  $region21: #{graph_convolution.1} parent=0 // pred_fallthru
    _
  // Predicated region
  $region22: #{graph_convolution.1} parent=0 // pred_check
    _
  $region23: #{graph_convolution.1} parent=0 // pred_check_branch
    %388 = sbr.rel (0) target = $region25
  $region24: #{graph_convolution.1} parent=0 // pred_region
    _
  $region25: #{graph_convolution.1} parent=0 // pred_fallthru
    _

</llo_original>
